<compile_context>
chip_gen: v6e
topology: v6e:2x2x1
jax: 0.10.0
libtpu: 0.0.40
codegen_flags: <defaults>
</compile_context>

<pallas_src>
import functools
import math

import jax
import jax.numpy as jnp
from jax.experimental import pallas as pl
from jax.experimental.pallas import tpu as pltpu


# ----------------------------------------------------------------------------
# Sinusoidal table (matches the PyTorch buffer), stored as (max_len, d_model).
# ----------------------------------------------------------------------------
def _make_pe(d_model: int, max_len: int = 1024) -> jnp.ndarray:
    position = jnp.arange(max_len, dtype=jnp.float32)[:, None]            # (L, 1)
    div_term = jnp.exp(jnp.arange(0, d_model, 2, dtype=jnp.float32)
                       * (-math.log(10000.0) / d_model))                  # (ceil(D/2),)
    ang = position * div_term                                             # (L, ceil(D/2))
    pe = jnp.zeros((max_len, d_model), dtype=jnp.float32)
    pe = pe.at[:, 0::2].set(jnp.sin(ang))
    pe = pe.at[:, 1::2].set(jnp.cos(ang[:, : d_model // 2]))              # odd-D safe
    return pe


# ----------------------------------------------------------------------------
# Kernel: lane-dense add; pe (tS, D) replicated along lanes to (tS, reps*D).
# ----------------------------------------------------------------------------
def _add_pe_kernel(x_ref, pe_ref, o_ref, *, reps: int):
    pe = pe_ref[...]
    if reps > 1:                                   # trace-time constant
        pe = jnp.concatenate([pe] * reps, axis=-1)  # lane replication, rides on slack
    o_ref[...] = x_ref[...] + pe


# ----------------------------------------------------------------------------
# Tuning helpers.
# ----------------------------------------------------------------------------
_SPLIT_BYTES = 512 * 1024        # above this, force >=2 row blocks (v7x 2nd TC)
_MIN_PALLAS_BYTES = 2 * 1024 * 1024  # below this, XLA's fused add wins


def _sublane_multiple(itemsize: int) -> int:
    # 8 rows for 4-byte, 16 for 2-byte, 32 for 1-byte dtypes.
    return max(8, 32 // max(1, itemsize))


def _hw_tuning():
    """(target_block_bytes, vmem_limit_bytes), conservative defaults otherwise."""
    target_block = 2 * 1024 * 1024
    vmem_limit = 32 * 1024 * 1024
    try:
        info = pltpu.get_tpu_info()
        vmem_cap = int(getattr(info, "vmem_capacity_bytes", 128 * 1024 * 1024))
        if vmem_cap <= 80 * 1024 * 1024:
            # v7x-like: 64 MiB VMEM but ~3.2 TB/s HBM -> bigger blocks amortize
            # the ~0.35 us per-grid-step overhead; 44 MiB scoped limit still
            # leaves headroom under 64 MiB physical.
            target_block = 6 * 1024 * 1024
            vmem_limit = 44 * 1024 * 1024
    except Exception:
        pass
    return target_block, vmem_limit


def _choose_tiles(S, B, D, itemsize, *, target_block_bytes, vmem_budget_bytes):
    """Pick (tS, tBD) honoring dtype tiling rules and the VMEM budget.

    Returns None if no legal tiling fits (caller falls back to plain XLA).
    """
    BD = B * D
    sublane = _sublane_multiple(itemsize)

    def vmem_per_step(tS, tBD):
        # x block + out block (tS*tBD each) + pe block (tS*D), double-buffered.
        return 2 * itemsize * tS * (2 * tBD + D)

    # Lane axis: full width preferred (always layout-legal).  Tile in whole
    # multiples of D only if a minimum-height full-width block busts the budget.
    tBD = BD
    if vmem_per_step(sublane, BD) > vmem_budget_bytes:
        if D % 128 != 0:
            return None
        tB = vmem_budget_bytes // (2 * itemsize * sublane * 2 * D)
        tB = int(max(1, min(tB, B)))
        tBD = tB * D
        if vmem_per_step(sublane, tBD) > vmem_budget_bytes:
            return None

    # Sublane axis: aim for ~target_block_bytes on the x stream, stay in budget.
    rows = max(sublane, target_block_bytes // max(1, tBD * itemsize))
    rows = (rows // sublane) * sublane
    while rows > sublane and vmem_per_step(rows, tBD) > vmem_budget_bytes:
        rows = max(sublane, (rows // 2 // sublane) * sublane)

    if rows >= S:
        tS = S                                      # full extent -> always legal
    else:
        tS = max(sublane, (rows // sublane) * sublane)
    return tS, tBD


# ----------------------------------------------------------------------------
# Wrapper.
# ----------------------------------------------------------------------------
def positional_encoding_pallas(x: jnp.ndarray, pe: jnp.ndarray) -> jnp.ndarray:
    """x: (S, B, D); pe: (max_len, D). Returns x + pe[:S] broadcast over batch."""
    S, B, D = x.shape
    BD = B * D
    out_dtype = jnp.promote_types(x.dtype, pe.dtype)   # match PyTorch promotion
    itemsize = jnp.dtype(out_dtype).itemsize

    target_block, vmem_limit = _hw_tuning()
    budget = int(0.8 * vmem_limit)                      # 20% headroom
    tiles = _choose_tiles(S, B, D, itemsize,
                          target_block_bytes=target_block,
                          vmem_budget_bytes=budget)
    if tiles is None:
        # Pathological shape (huge D not a multiple of 128): plain XLA add.
        return x.astype(out_dtype) + pe[:S].astype(out_dtype)[:, None, :]

    tS, tBD = tiles
    sublane = _sublane_multiple(itemsize)

    # Force >=2 row blocks for non-tiny arrays: engages v7x's 2nd TensorCore and
    # enables DMA/compute overlap; costless on v5e/v6e.
    if S * BD * itemsize > _SPLIT_BYTES and pl.cdiv(S, tS) < 2 and S > sublane:
        half = -(-S // 2)
        tS_split = -(-half // sublane) * sublane
        if tS_split < S:
            tS = tS_split

    x2d = x.reshape(S, BD).astype(out_dtype)            # free row-major reshape
    pe2d = pe[:S].astype(out_dtype)                     # (S, D): NOT tiled in HBM

    reps = tBD // D
    # Lane axis (j) innermost: pe's block index (i, 0) is constant across it, so
    # Pallas skips re-DMAing the pe block between consecutive lane steps.
    grid = (pl.cdiv(S, tS), pl.cdiv(BD, tBD))

    out2d = pl.pallas_call(
        functools.partial(_add_pe_kernel, reps=reps),
        out_shape=jax.ShapeDtypeStruct((S, BD), out_dtype),
        grid=grid,
        in_specs=[pl.BlockSpec((tS, tBD), lambda i, j: (i, j)),
                  pl.BlockSpec((tS, D), lambda i, j: (i, 0))],
        out_specs=pl.BlockSpec((tS, tBD), lambda i, j: (i, j)),
        input_output_aliases={0: 0},                    # add is naturally in-place
        compiler_params=pltpu.CompilerParams(
            dimension_semantics=("parallel", "parallel"),
            vmem_limit_bytes=vmem_limit,
        ),
    )(x2d, pe2d)
    return out2d.reshape(S, B, D)


def positional_encoding(x: jnp.ndarray, pe: jnp.ndarray) -> jnp.ndarray:
    """Dispatching wrapper: tiny inputs fall back to plain XLA broadcast-add."""
    if x.size * jnp.dtype(x.dtype).itemsize < _MIN_PALLAS_BYTES:
        return x + pe[: x.shape[0]][:, None, :]
    return positional_encoding_pallas(x, pe)


if __name__ == "__main__":
    key = jax.random.PRNGKey(0)
    max_len = 1024

    # Small shape consistent with the module: seq=8, batch=2, hidden=32.
    S, B, D = 8, 2, 32
    x = jax.random.normal(key, (S, B, D), dtype=jnp.float32)
    pe = _make_pe(D, max_len)

    out = jax.block_until_ready(positional_encoding_pallas(x, pe))
    ref = x + pe[:S][:, None, :]
    assert out.shape == (S, B, D)
    assert jnp.allclose(out, ref, atol=1e-6, rtol=1e-6), "mismatch vs reference (small)"

    # Larger shape that forces a real multi-block grid (pipelined / split path).
    S2, B2, D2 = 512, 4, 256
    x2 = jax.random.normal(jax.random.PRNGKey(1), (S2, B2, D2), dtype=jnp.float32)
    pe2 = _make_pe(D2, max_len)
    out2 = jax.block_until_ready(positional_encoding_pallas(x2, pe2))
    ref2 = x2 + pe2[:S2][:, None, :]
    assert jnp.allclose(out2, ref2, atol=1e-6, rtol=1e-6), "mismatch vs reference (tiled)"

    # Dispatcher sanity (falls back to XLA for the tiny shape).
    out3 = jax.block_until_ready(positional_encoding(x, pe))
    assert jnp.allclose(out3, ref, atol=1e-6, rtol=1e-6)

    print("KERNEL_OK")
</pallas_src>

<mosaic_0001>
module attributes {stable_mosaic.version = 11 : i64} {
  func.func @_add_pe_kernel(%arg0: i32, %arg1: i32, %arg2: memref<8x64xf32, #tpu.memory_space<vmem>>, %arg3: memref<8x32xf32, #tpu.memory_space<vmem>>, %arg4: memref<8x64xf32, #tpu.memory_space<vmem>>) attributes {dimension_semantics = [#tpu.dimension_semantics<parallel>, #tpu.dimension_semantics<parallel>], iteration_bounds = array<i64: 1, 1>, scalar_prefetch = 0 : i64, scratch_operands = 0 : i64, tpu.core_type = #tpu.core_type<tc>, window_params = [{transform_indices = @transform_0, window_bounds = array<i64: 8, 64>}, {transform_indices = @transform_1, window_bounds = array<i64: 8, 32>}, {transform_indices = @transform_2, window_bounds = array<i64: 8, 64>}]} {
    %c0 = arith.constant 0 : index
    %c0_0 = arith.constant 0 : index
    %0 = vector.load %arg3[%c0, %c0_0] : memref<8x32xf32, #tpu.memory_space<vmem>>, vector<8x32xf32>
    %1 = tpu.concatenate %0, %0 in 1 : vector<8x32xf32>, vector<8x32xf32> -> vector<8x64xf32>
    %c0_1 = arith.constant 0 : index
    %c0_2 = arith.constant 0 : index
    %2 = vector.load %arg2[%c0_1, %c0_2] : memref<8x64xf32, #tpu.memory_space<vmem>>, vector<8x64xf32>
    %3 = arith.addf %2, %1 : vector<8x64xf32>
    %c0_3 = arith.constant 0 : index
    %c0_4 = arith.constant 0 : index
    %4 = vector.load %arg4[%c0_3, %c0_4] : memref<8x64xf32, #tpu.memory_space<vmem>>, vector<8x64xf32>
    tpu.vector_store %arg4[%c0_3, %c0_4], %3 {strides = array<i32>} : memref<8x64xf32, #tpu.memory_space<vmem>>, vector<8x64xf32>,
    return
  }
  func.func @transform_0(%arg0: i32, %arg1: i32) -> (i32, i32) {
    %c0_i32 = arith.constant 0 : i32
    return %arg0, %arg1 : i32, i32
  }
  func.func @transform_1(%arg0: i32, %arg1: i32) -> (i32, i32) {
    %c0_i32 = arith.constant 0 : i32
    %c0_i32_0 = arith.constant 0 : i32
    return %arg0, %c0_i32 : i32, i32
  }
  func.func @transform_2(%arg0: i32, %arg1: i32) -> (i32, i32) {
    %c0_i32 = arith.constant 0 : i32
    return %arg0, %arg1 : i32, i32
  }
}

</mosaic_0001>

<llo_original>
// kernel: tpu_custom_call.1
$region0: #{tpu_custom_call.1}
  #allocation0 [shape = 'u32[]', space=smem, size = 0x4, offset = 0x4, fixed_abs, tag = 'smem constant byte address 0x4 - core index']
  #allocation1 [shape = 'u32[144,128]{1,0:T(1,128)}', space=vmem, size = 0x12000, scoped, tag = 'internal scratch']
  %s0 = inlined_call_operand.hbm [shape: f32[8,64], index: 0, kind: input, shape index: {}, may-alias: {0,2}]
  %s1 = inlined_call_operand.vmem [shape: f32[8,32], index: 1, kind: input, shape index: {}]
  %s2 = inlined_call_operand.hbm [shape: f32[8,64], index: 2, kind: output, shape index: {}, may-alias: {0,2}]
  %s3 = sld [smem:[#allocation0]]
  $region22: #{tpu_custom_call.1} parent=0
    _
  %s5 = ssub.s32 1, %s3
  %s6 = scalar_select 0, %s5, %s3
  $region1: #{tpu_custom_call.1} parent=0
    #allocation2 [shape = 'u8[4096]{0}', space=vmem, size = 0x1000, scoped, tag = 'input window, operand 0, single buffered']
    #allocation3 [shape = 's32[1]{0}', space=sflag, size = 0x4, scoped, tag = 'scoped memory for tpu_custom_call.1']
    #allocation4 [shape = 's32[1]{0}', space=sflag, size = 0x4, scoped, tag = 'scoped memory for tpu_custom_call.1']
    #allocation5 [shape = 'u8[4096]{0}', space=vmem, size = 0x1000, scoped, tag = 'output window, operand 0, single buffered']
    %7 = vsyncpa [#allocation3], 0
    %8 = vsyncpa [#allocation4], 0
    // Predicated region
    $region2: #{tpu_custom_call.1} parent=1 // pred_check
      _
    $region3: #{tpu_custom_call.1} parent=1 // pred_check_branch
      %10 = sbr.rel (0) target = $region5
    $region4: #{tpu_custom_call.1} parent=1 // pred_region
      %s12 = ssub.s32 128, 128
      %13 = vsyncadd [#allocation3], %s12
      %s15 = sshll.u32 [#allocation2], 4
      %s16 = int_to_ptr.vmem [resolvable:$true] %s15
      %18 = dma.hbm_to_vmem [thread:$0]  %s0, 128, %s16, [#allocation3]
    $region5: #{tpu_custom_call.1} parent=1 // pred_fallthru
      _
    // Predicated region
    $region6: #{tpu_custom_call.1} parent=1 // pred_check
      _
    $region7: #{tpu_custom_call.1} parent=1 // pred_check_branch
      %20 = sbr.rel (0) target = $region9
    $region8: #{tpu_custom_call.1} parent=1 // pred_region
      _
    $region9: #{tpu_custom_call.1} parent=1 // pred_fallthru
      _
    // Predicated region
    $region10: #{tpu_custom_call.1} parent=1 // pred_check
      _
    $region11: #{tpu_custom_call.1} parent=1 // pred_check_branch
      %22 = sbr.rel (0) target = $region13
    $region12: #{tpu_custom_call.1} parent=1 // pred_region
      %23 = dma.done [#allocation3], 128
    $region13: #{tpu_custom_call.1} parent=1 // pred_fallthru
      _
    %v24 = vld [vmem:[%s1] sm:$0xff]
    %26 = vrot.lane.b32.xlu0 %v24, 32
    %v27 = vpop.permute.xlu0 %26
    %vm29 = vcmask 261120
    %v30 = vsel %vm29, %v24, %v27
    %v31 = vld [vmem:[#allocation2] sm:$0xff]
    %v32 = vadd.f32 %v31, %v30
    %vm33 = vcmask 523264
    %34 = vst.msk [vmem:[#allocation5] sm:$0xff] %vm33, %v32
    // Predicated region
    $region14: #{tpu_custom_call.1} parent=1 // pred_check
      _
    $region15: #{tpu_custom_call.1} parent=1 // pred_check_branch
      %36 = sbr.rel (0) target = $region17
    $region16: #{tpu_custom_call.1} parent=1 // pred_region
      %s38 = ssub.s32 128, 128
      %39 = vsyncadd [#allocation4], %s38
      %s41 = sshll.u32 [#allocation5], 4
      %s42 = int_to_ptr.vmem [resolvable:$true] %s41
      %44 = dma.vmem_to_hbm [thread:$0]  %s42, 128, %s2, [#allocation4]
    $region17: #{tpu_custom_call.1} parent=1 // pred_fallthru
      _
    // Predicated region
    $region18: #{tpu_custom_call.1} parent=1 // pred_check
      _
    $region19: #{tpu_custom_call.1} parent=1 // pred_check_branch
      %46 = sbr.rel (0) target = $region21
    $region20: #{tpu_custom_call.1} parent=1 // pred_region
      %47 = dma.done [#allocation4], 128
    $region21: #{tpu_custom_call.1} parent=1 // pred_fallthru
      _
    %48 = vsyncpa [#allocation3], 1
    %49 = vsyncpa [#allocation4], 1

</llo_original>
